<compile_context>
chip_gen: v6e
topology: v6e:2x2x1
jax: 0.10.0
libtpu: 0.0.40
codegen_flags: <defaults>
</compile_context>

<pallas_src>
import numpy as np
import jax
import jax.numpy as jnp
from jax.experimental import pallas as pl
from jax.experimental.pallas import tpu as pltpu

# ----------------------------- problem sizes ------------------------------
B = 8           # batch
OBS_DIM = 32    # flattened observation dim
ACT_DIM = 8     # action dim
HIDDEN = 32     # MLP hidden width
EPS = 1e-7      # eps added to std (module default)

H2 = 2 * HIDDEN          # 64 : fused twin-Q hidden width
A2 = 2 * ACT_DIM         # 16 : merged policy-head width
QIN = OBS_DIM + ACT_DIM  # 40 : Q-net input width

# ------------------------- parameter slab layout ---------------------------
# One (272, 128) f32 slab; every region starts at an 8-aligned row, column 0.
SLAB_COLS = 128
ROW_PW1 = 0                    # policy layer 1 weight (OBS, H)
ROW_PW2 = ROW_PW1 + OBS_DIM    # 32  policy layer 2 weight (H, H)
ROW_PW3 = ROW_PW2 + HIDDEN     # 64  merged policy head weight (H, 2A)
ROW_QW1 = ROW_PW3 + HIDDEN     # 96  fused Q layer 1 weight (OBS+A, 2H)
ROW_QW2 = ROW_QW1 + QIN        # 136 block-diag Q layer 2 weight (2H, 2H)
ROW_QW3 = ROW_QW2 + H2         # 200 block-diag Q layer 3 weight (2H, 2)
ROW_BIAS = ROW_QW3 + H2        # 264 bias rows start here (one bias per row)
R_PB1, R_PB2, R_PB3 = ROW_BIAS, ROW_BIAS + 1, ROW_BIAS + 2
R_QB1, R_QB2, R_QB3 = ROW_BIAS + 3, ROW_BIAS + 4, ROW_BIAS + 5
R_ALPHA = ROW_BIAS + 6         # 270: exp(log_alpha) stored at [R_ALPHA, 0]
SLAB_ROWS = ROW_BIAS + 8       # 272 (multiple of 8)

OUT_W = 128  # lane-dense packed output row: [mean(8) | std(8) | val(1) | zeros]


# ------------------------------- kernel -----------------------------------
def _softplus(v):
    # numerically stable softplus (matches torch.nn.functional.softplus)
    return jnp.maximum(v, 0.0) + jnp.log1p(jnp.exp(-jnp.abs(v)))


def sac_forward_kernel(x_ref, slab_ref, out_ref):
    relu = lambda v: jnp.maximum(v, 0.0)
    dot = lambda a, b: jnp.dot(a, b, preferred_element_type=jnp.float32)

    x = x_ref[...]                                              # (TB, OBS)

    # ----- policy MLP: obs -> H -> H -> (mean | raw_std) in ONE head matmul -----
    h1 = relu(dot(x, slab_ref[ROW_PW1:ROW_PW1 + OBS_DIM, 0:HIDDEN])
              + slab_ref[R_PB1:R_PB1 + 1, 0:HIDDEN])
    h2 = relu(dot(h1, slab_ref[ROW_PW2:ROW_PW2 + HIDDEN, 0:HIDDEN])
              + slab_ref[R_PB2:R_PB2 + 1, 0:HIDDEN])
    pol = (dot(h2, slab_ref[ROW_PW3:ROW_PW3 + HIDDEN, 0:A2])
           + slab_ref[R_PB3:R_PB3 + 1, 0:A2])                   # (TB, 2A)
    a_mean = pol[:, 0:ACT_DIM]
    a_raw_std = pol[:, ACT_DIM:A2]
    a_std = _softplus(a_raw_std) + EPS
    t_a_mean = jnp.tanh(a_mean)                                 # squashed mean

    # ----- fused twin Q nets on concat(x, tanh(mean)) -----
    # layer 1: [x | a] @ [q1w1 | q2w1]  (two pushes from one contiguous weight)
    g1 = relu(dot(x, slab_ref[ROW_QW1:ROW_QW1 + OBS_DIM, 0:H2])
              + dot(t_a_mean, slab_ref[ROW_QW1 + OBS_DIM:ROW_QW1 + QIN, 0:H2])
              + slab_ref[R_QB1:R_QB1 + 1, 0:H2])                # (TB, 2H)
    # layer 2: block-diag(q1w2, q2w2)
    g2 = relu(dot(g1, slab_ref[ROW_QW2:ROW_QW2 + H2, 0:H2])
              + slab_ref[R_QB2:R_QB2 + 1, 0:H2])                # (TB, 2H)
    # layer 3: block-diag(q1w3, q2w3) -> (TB, 2) = [q1, q2]
    q = (dot(g2, slab_ref[ROW_QW3:ROW_QW3 + H2, 0:2])
         + slab_ref[R_QB3:R_QB3 + 1, 0:2])
    min_q = jnp.minimum(q[:, 0:1], q[:, 1:2])                   # (TB, 1)

    # ----- squashed-Gaussian log-prob evaluated at the mean -----
    # Normal(a_mean, a_std).log_prob(a_mean) = -log(std) - 0.5*log(2*pi)
    log_prob = -jnp.log(a_std) - 0.5 * jnp.log(2.0 * jnp.pi)
    # TanhTransform.log_abs_det_jacobian(x, y) = 2*(log2 - x - softplus(-2x))
    ldj = 2.0 * (jnp.log(2.0) - a_mean - _softplus(-2.0 * a_mean))
    lprob = jnp.sum(log_prob - ldj, axis=-1, keepdims=True)     # (TB, 1)

    alpha = slab_ref[R_ALPHA:R_ALPHA + 1, 0:1]    # exp(log_alpha), precomputed
    val = min_q - alpha * lprob                                 # (TB, 1)

    # ----- single lane-dense packed output row, one full-width store -----
    pad = jnp.zeros((a_mean.shape[0], OUT_W - (A2 + 1)), jnp.float32)
    out_ref[...] = jnp.concatenate([a_mean, a_std, val, pad], axis=-1)


# ------------------------------- wrapper -----------------------------------
@jax.jit
def sac_forward(x, h, slab):
    """Runs the SquashedGaussianSoftActorCritic forward pass.

    Returns ((a_mean, a_std), val, h) — dist is represented by (mean, std) of
    the Normal (pre-squash), exactly like the PyTorch forward's `dist`.
    """
    xb = x.reshape(x.shape[0], -1).astype(jnp.float32)   # flatten
    b = xb.shape[0]
    tb = b if b <= 256 else 256          # batch tile
    assert b % tb == 0, "batch must be a multiple of the batch tile"

    out = pl.pallas_call(
        sac_forward_kernel,
        out_shape=jax.ShapeDtypeStruct((b, OUT_W), jnp.float32),
        grid=(b // tb,),
        in_specs=[
            pl.BlockSpec((tb, OBS_DIM), lambda i: (i, 0)),
            # constant index_map -> parameter slab stays resident in VMEM
            pl.BlockSpec((SLAB_ROWS, SLAB_COLS), lambda i: (0, 0)),
        ],
        out_specs=pl.BlockSpec((tb, OUT_W), lambda i: (i, 0)),
        compiler_params=pltpu.CompilerParams(
            dimension_semantics=("parallel",)),
    )(xb, slab)

    a_mean = out[:, 0:ACT_DIM]
    a_std = out[:, ACT_DIM:A2]
    val = out[:, A2:A2 + 1]
    return (a_mean, a_std), val, h


# --------------------------- parameter creation -----------------------------
def _linear(key, fan_in, fan_out):
    """PyTorch nn.Linear-style uniform init; bias stored as (1, fan_out)."""
    kw, kb = jax.random.split(key)
    bound = 1.0 / np.sqrt(fan_in)
    w = jax.random.uniform(kw, (fan_in, fan_out), jnp.float32, -bound, bound)
    b = jax.random.uniform(kb, (1, fan_out), jnp.float32, -bound, bound)
    return w, b


def make_params(key):
    keys = jax.random.split(key, 9)
    p = {}
    # policy: OBS -> H -> H -> 2A (head kept as a single merged matmul)
    p["pw1"], p["pb1"] = _linear(keys[0], OBS_DIM, HIDDEN)
    p["pw2"], p["pb2"] = _linear(keys[1], HIDDEN, HIDDEN)
    p["pw3"], p["pb3"] = _linear(keys[2], HIDDEN, 2 * ACT_DIM)
    # twin Q nets: (OBS + A) -> H -> H -> 1
    for name, ks in (("q1", keys[3:6]), ("q2", keys[6:9])):
        p[name + "w1"], p[name + "b1"] = _linear(ks[0], QIN, HIDDEN)
        p[name + "w2"], p[name + "b2"] = _linear(ks[1], HIDDEN, HIDDEN)
        p[name + "w3"], p[name + "b3"] = _linear(ks[2], HIDDEN, 1)
    # log_alpha = log(initial_alpha) = log(1.0) = 0
    p["log_alpha"] = jnp.zeros((1,), jnp.float32)
    return p


def pack_slab(p):
    """Pack all weights/biases + exp(log_alpha) into one (272, 128) f32 slab."""
    s = np.zeros((SLAB_ROWS, SLAB_COLS), np.float32)
    # policy weights
    s[ROW_PW1:ROW_PW1 + OBS_DIM, 0:HIDDEN] = np.asarray(p["pw1"])
    s[ROW_PW2:ROW_PW2 + HIDDEN, 0:HIDDEN] = np.asarray(p["pw2"])
    s[ROW_PW3:ROW_PW3 + HIDDEN, 0:A2] = np.asarray(p["pw3"])
    # fused twin-Q layer 1: [q1w1 | q2w1]  -> (OBS+A, 2H)
    s[ROW_QW1:ROW_QW1 + QIN, 0:HIDDEN] = np.asarray(p["q1w1"])
    s[ROW_QW1:ROW_QW1 + QIN, HIDDEN:H2] = np.asarray(p["q2w1"])
    # block-diagonal layer 2: (2H, 2H)
    s[ROW_QW2:ROW_QW2 + HIDDEN, 0:HIDDEN] = np.asarray(p["q1w2"])
    s[ROW_QW2 + HIDDEN:ROW_QW2 + H2, HIDDEN:H2] = np.asarray(p["q2w2"])
    # block-diagonal layer 3: (2H, 2)
    s[ROW_QW3:ROW_QW3 + HIDDEN, 0:1] = np.asarray(p["q1w3"])
    s[ROW_QW3 + HIDDEN:ROW_QW3 + H2, 1:2] = np.asarray(p["q2w3"])
    # biases: one bias vector per sublane row
    s[R_PB1, 0:HIDDEN] = np.asarray(p["pb1"])[0]
    s[R_PB2, 0:HIDDEN] = np.asarray(p["pb2"])[0]
    s[R_PB3, 0:A2] = np.asarray(p["pb3"])[0]
    s[R_QB1, 0:HIDDEN] = np.asarray(p["q1b1"])[0]
    s[R_QB1, HIDDEN:H2] = np.asarray(p["q2b1"])[0]
    s[R_QB2, 0:HIDDEN] = np.asarray(p["q1b2"])[0]
    s[R_QB2, HIDDEN:H2] = np.asarray(p["q2b2"])[0]
    s[R_QB3, 0:1] = np.asarray(p["q1b3"])[0]
    s[R_QB3, 1:2] = np.asarray(p["q2b3"])[0]
    # alpha = exp(log_alpha), precomputed host-side
    s[R_ALPHA, 0] = float(np.exp(np.asarray(p["log_alpha"])[0]))
    return jnp.asarray(s)


# --------------------------- pure-JAX reference ------------------------------
def sac_forward_ref(x, p):
    xb = x.reshape(x.shape[0], -1).astype(jnp.float32)
    relu = lambda v: jnp.maximum(v, 0.0)
    h1 = relu(xb @ p["pw1"] + p["pb1"])
    h2 = relu(h1 @ p["pw2"] + p["pb2"])
    pol = h2 @ p["pw3"] + p["pb3"]
    a_mean, a_raw_std = pol[:, :ACT_DIM], pol[:, ACT_DIM:]
    a_std = jax.nn.softplus(a_raw_std) + EPS
    t_a_mean = jnp.tanh(a_mean)
    xa = jnp.concatenate([xb, t_a_mean], axis=1)

    def q(n):
        g1 = relu(xa @ p[n + "w1"] + p[n + "b1"])
        g2 = relu(g1 @ p[n + "w2"] + p[n + "b2"])
        return g2 @ p[n + "w3"] + p[n + "b3"]

    min_q = jnp.minimum(q("q1"), q("q2"))
    log_prob = -jnp.log(a_std) - 0.5 * jnp.log(2.0 * jnp.pi)
    ldj = 2.0 * (jnp.log(2.0) - a_mean - jax.nn.softplus(-2.0 * a_mean))
    lprob = jnp.sum(log_prob - ldj, axis=-1, keepdims=True)
    val = min_q - jnp.exp(p["log_alpha"][0]) * lprob
    return a_mean, a_std, val


# ---------------------------------- main -------------------------------------
if __name__ == "__main__":
    key = jax.random.PRNGKey(0)
    k_x, k_p = jax.random.split(key)
    x = jax.random.normal(k_x, (B, OBS_DIM), jnp.float32)
    h = jnp.zeros((B, 1), jnp.float32)   # hidden state, passed through untouched
    params = make_params(k_p)
    slab = pack_slab(params)

    (a_mean, a_std), val, h_out = sac_forward(x, h, slab)
    jax.block_until_ready((a_mean, a_std, val, h_out))

    # correctness check against pure-JAX reference (unfused weights)
    r_mean, r_std, r_val = sac_forward_ref(x, params)
    assert jnp.allclose(a_mean, r_mean, atol=1e-5, rtol=1e-5)
    assert jnp.allclose(a_std, r_std, atol=1e-5, rtol=1e-5)
    assert jnp.allclose(val, r_val, atol=1e-4, rtol=1e-4)

    print("KERNEL_OK")
</pallas_src>

<mosaic_0001>
module attributes {stable_mosaic.version = 11 : i64} {
  func.func @sac_forward_kernel(%arg0: i32, %arg1: memref<8x32xf32, #tpu.memory_space<vmem>>, %arg2: memref<272x128xf32, #tpu.memory_space<vmem>>, %arg3: memref<8x128xf32, #tpu.memory_space<vmem>>) attributes {dimension_semantics = [#tpu.dimension_semantics<parallel>], iteration_bounds = array<i64: 1>, scalar_prefetch = 0 : i64, scratch_operands = 0 : i64, tpu.core_type = #tpu.core_type<tc>, window_params = [{transform_indices = @transform_0, window_bounds = array<i64: 8, 32>}, {pipeline_mode = #tpu.pipeline_mode<synchronous>, transform_indices = @transform_1, window_bounds = array<i64: 272, 128>}, {transform_indices = @transform_2, window_bounds = array<i64: 8, 128>}]} {
    %c0 = arith.constant 0 : index
    %c0_0 = arith.constant 0 : index
    %0 = vector.load %arg1[%c0, %c0_0] : memref<8x32xf32, #tpu.memory_space<vmem>>, vector<8x32xf32>
    %c0_1 = arith.constant 0 : index
    %c0_2 = arith.constant 0 : index
    %1 = vector.load %arg2[%c0_1, %c0_2] : memref<272x128xf32, #tpu.memory_space<vmem>>, vector<32x32xf32>
    %cst = arith.constant dense<0.000000e+00> : vector<8x32xf32>
    %2 = tpu.matmul %0, %1, %cst {dimension_numbers = #tpu.dot_dimension_numbers<[1], [0], [0], [1], [0, 0, 1, 1], [], []>} : vector<8x32xf32>, vector<32x32xf32>, vector<8x32xf32> -> vector<8x32xf32>
    %c264 = arith.constant 264 : index
    %c0_3 = arith.constant 0 : index
    %3 = vector.load %arg2[%c264, %c0_3] : memref<272x128xf32, #tpu.memory_space<vmem>>, vector<1x32xf32>
    %4 = vector.broadcast %3 : vector<1x32xf32> to vector<8x32xf32>
    %5 = arith.addf %2, %4 : vector<8x32xf32>
    %cst_4 = arith.constant 0.000000e+00 : f32
    %6 = vector.broadcast %cst_4 : f32 to vector<8x32xf32>
    %7 = arith.maximumf %5, %6 : vector<8x32xf32>
    %c32 = arith.constant 32 : index
    %c0_5 = arith.constant 0 : index
    %8 = vector.load %arg2[%c32, %c0_5] : memref<272x128xf32, #tpu.memory_space<vmem>>, vector<32x32xf32>
    %cst_6 = arith.constant dense<0.000000e+00> : vector<8x32xf32>
    %9 = tpu.matmul %7, %8, %cst_6 {dimension_numbers = #tpu.dot_dimension_numbers<[1], [0], [0], [1], [0, 0, 1, 1], [], []>} : vector<8x32xf32>, vector<32x32xf32>, vector<8x32xf32> -> vector<8x32xf32>
    %c265 = arith.constant 265 : index
    %c0_7 = arith.constant 0 : index
    %10 = vector.load %arg2[%c265, %c0_7] : memref<272x128xf32, #tpu.memory_space<vmem>>, vector<1x32xf32>
    %11 = vector.broadcast %10 : vector<1x32xf32> to vector<8x32xf32>
    %12 = arith.addf %9, %11 : vector<8x32xf32>
    %cst_8 = arith.constant 0.000000e+00 : f32
    %13 = vector.broadcast %cst_8 : f32 to vector<8x32xf32>
    %14 = arith.maximumf %12, %13 : vector<8x32xf32>
    %c64 = arith.constant 64 : index
    %c0_9 = arith.constant 0 : index
    %15 = vector.load %arg2[%c64, %c0_9] : memref<272x128xf32, #tpu.memory_space<vmem>>, vector<32x16xf32>
    %cst_10 = arith.constant dense<0.000000e+00> : vector<8x16xf32>
    %16 = tpu.matmul %14, %15, %cst_10 {dimension_numbers = #tpu.dot_dimension_numbers<[1], [0], [0], [1], [0, 0, 1, 1], [], []>} : vector<8x32xf32>, vector<32x16xf32>, vector<8x16xf32> -> vector<8x16xf32>
    %c266 = arith.constant 266 : index
    %c0_11 = arith.constant 0 : index
    %17 = vector.load %arg2[%c266, %c0_11] : memref<272x128xf32, #tpu.memory_space<vmem>>, vector<1x16xf32>
    %18 = vector.broadcast %17 : vector<1x16xf32> to vector<8x16xf32>
    %19 = arith.addf %16, %18 : vector<8x16xf32>
    %20 = vector.extract_strided_slice %19 {offsets = [0, 0], sizes = [8, 8], strides = [1, 1]} : vector<8x16xf32> to vector<8x8xf32>
    %21 = vector.extract_strided_slice %19 {offsets = [0, 8], sizes = [8, 8], strides = [1, 1]} : vector<8x16xf32> to vector<8x8xf32>
    %cst_12 = arith.constant 0.000000e+00 : f32
    %22 = vector.broadcast %cst_12 : f32 to vector<8x8xf32>
    %23 = arith.maximumf %21, %22 : vector<8x8xf32>
    %24 = math.absf %21 : vector<8x8xf32>
    %cst_13 = arith.constant 0.000000e+00 : f32
    %25 = vector.broadcast %cst_13 : f32 to vector<8x8xf32>
    %26 = arith.subf %25, %24 : vector<8x8xf32>
    %27 = math.exp %26 : vector<8x8xf32>
    %28 = math.log1p %27 : vector<8x8xf32>
    %29 = arith.addf %23, %28 : vector<8x8xf32>
    %cst_14 = arith.constant 1.000000e-07 : f32
    %30 = vector.broadcast %cst_14 : f32 to vector<8x8xf32>
    %31 = arith.addf %29, %30 : vector<8x8xf32>
    %32 = math.tanh %20 : vector<8x8xf32>
    %c96 = arith.constant 96 : index
    %c0_15 = arith.constant 0 : index
    %33 = vector.load %arg2[%c96, %c0_15] : memref<272x128xf32, #tpu.memory_space<vmem>>, vector<32x64xf32>
    %cst_16 = arith.constant dense<0.000000e+00> : vector<8x64xf32>
    %34 = tpu.matmul %0, %33, %cst_16 {dimension_numbers = #tpu.dot_dimension_numbers<[1], [0], [0], [1], [0, 0, 1, 1], [], []>} : vector<8x32xf32>, vector<32x64xf32>, vector<8x64xf32> -> vector<8x64xf32>
    %c128 = arith.constant 128 : index
    %c0_17 = arith.constant 0 : index
    %35 = vector.load %arg2[%c128, %c0_17] : memref<272x128xf32, #tpu.memory_space<vmem>>, vector<8x64xf32>
    %cst_18 = arith.constant dense<0.000000e+00> : vector<8x64xf32>
    %36 = tpu.matmul %32, %35, %cst_18 {dimension_numbers = #tpu.dot_dimension_numbers<[1], [0], [0], [1], [0, 0, 1, 1], [], []>} : vector<8x8xf32>, vector<8x64xf32>, vector<8x64xf32> -> vector<8x64xf32>
    %37 = arith.addf %34, %36 : vector<8x64xf32>
    %c267 = arith.constant 267 : index
    %c0_19 = arith.constant 0 : index
    %38 = vector.load %arg2[%c267, %c0_19] : memref<272x128xf32, #tpu.memory_space<vmem>>, vector<1x64xf32>
    %39 = vector.broadcast %38 : vector<1x64xf32> to vector<8x64xf32>
    %40 = arith.addf %37, %39 : vector<8x64xf32>
    %cst_20 = arith.constant 0.000000e+00 : f32
    %41 = vector.broadcast %cst_20 : f32 to vector<8x64xf32>
    %42 = arith.maximumf %40, %41 : vector<8x64xf32>
    %c136 = arith.constant 136 : index
    %c0_21 = arith.constant 0 : index
    %43 = vector.load %arg2[%c136, %c0_21] : memref<272x128xf32, #tpu.memory_space<vmem>>, vector<64x64xf32>
    %cst_22 = arith.constant dense<0.000000e+00> : vector<8x64xf32>
    %44 = tpu.matmul %42, %43, %cst_22 {dimension_numbers = #tpu.dot_dimension_numbers<[1], [0], [0], [1], [0, 0, 1, 1], [], []>} : vector<8x64xf32>, vector<64x64xf32>, vector<8x64xf32> -> vector<8x64xf32>
    %c268 = arith.constant 268 : index
    %c0_23 = arith.constant 0 : index
    %45 = vector.load %arg2[%c268, %c0_23] : memref<272x128xf32, #tpu.memory_space<vmem>>, vector<1x64xf32>
    %46 = vector.broadcast %45 : vector<1x64xf32> to vector<8x64xf32>
    %47 = arith.addf %44, %46 : vector<8x64xf32>
    %cst_24 = arith.constant 0.000000e+00 : f32
    %48 = vector.broadcast %cst_24 : f32 to vector<8x64xf32>
    %49 = arith.maximumf %47, %48 : vector<8x64xf32>
    %c200 = arith.constant 200 : index
    %c0_25 = arith.constant 0 : index
    %50 = vector.load %arg2[%c200, %c0_25] : memref<272x128xf32, #tpu.memory_space<vmem>>, vector<64x2xf32>
    %cst_26 = arith.constant dense<0.000000e+00> : vector<8x2xf32>
    %51 = tpu.matmul %49, %50, %cst_26 {dimension_numbers = #tpu.dot_dimension_numbers<[1], [0], [0], [1], [0, 0, 1, 1], [], []>} : vector<8x64xf32>, vector<64x2xf32>, vector<8x2xf32> -> vector<8x2xf32>
    %c269 = arith.constant 269 : index
    %c0_27 = arith.constant 0 : index
    %52 = vector.load %arg2[%c269, %c0_27] : memref<272x128xf32, #tpu.memory_space<vmem>>, vector<1x2xf32>
    %53 = vector.broadcast %52 : vector<1x2xf32> to vector<8x2xf32>
    %54 = arith.addf %51, %53 : vector<8x2xf32>
    %55 = vector.extract_strided_slice %54 {offsets = [0, 0], sizes = [8, 1], strides = [1, 1]} : vector<8x2xf32> to vector<8x1xf32>
    %56 = vector.extract_strided_slice %54 {offsets = [0, 1], sizes = [8, 1], strides = [1, 1]} : vector<8x2xf32> to vector<8x1xf32>
    %57 = arith.minimumf %55, %56 : vector<8x1xf32>
    %58 = math.log %31 : vector<8x8xf32>
    %cst_28 = arith.constant 0.000000e+00 : f32
    %59 = vector.broadcast %cst_28 : f32 to vector<8x8xf32>
    %60 = arith.subf %59, %58 : vector<8x8xf32>
    %cst_29 = arith.constant 6.28318548 : f32
    %61 = math.log %cst_29 : f32
    %cst_30 = arith.constant 5.000000e-01 : f32
    %62 = arith.mulf %cst_30, %61 : f32
    %63 = vector.broadcast %62 : f32 to vector<8x8xf32>
    %64 = arith.subf %60, %63 : vector<8x8xf32>
    %cst_31 = arith.constant 2.000000e+00 : f32
    %65 = math.log %cst_31 : f32
    %66 = vector.broadcast %65 : f32 to vector<8x8xf32>
    %67 = arith.subf %66, %20 : vector<8x8xf32>
    %cst_32 = arith.constant -2.000000e+00 : f32
    %68 = vector.broadcast %cst_32 : f32 to vector<8x8xf32>
    %69 = arith.mulf %68, %20 : vector<8x8xf32>
    %cst_33 = arith.constant 0.000000e+00 : f32
    %70 = vector.broadcast %cst_33 : f32 to vector<8x8xf32>
    %71 = arith.maximumf %69, %70 : vector<8x8xf32>
    %72 = math.absf %69 : vector<8x8xf32>
    %cst_34 = arith.constant 0.000000e+00 : f32
    %73 = vector.broadcast %cst_34 : f32 to vector<8x8xf32>
    %74 = arith.subf %73, %72 : vector<8x8xf32>
    %75 = math.exp %74 : vector<8x8xf32>
    %76 = math.log1p %75 : vector<8x8xf32>
    %77 = arith.addf %71, %76 : vector<8x8xf32>
    %78 = arith.subf %67, %77 : vector<8x8xf32>
    %cst_35 = arith.constant 2.000000e+00 : f32
    %79 = vector.broadcast %cst_35 : f32 to vector<8x8xf32>
    %80 = arith.mulf %79, %78 : vector<8x8xf32>
    %81 = arith.subf %64, %80 : vector<8x8xf32>
    %cst_36 = arith.constant dense<0.000000e+00> : vector<8xf32>
    %82 = vector.multi_reduction <add>, %81, %cst_36 [1] : vector<8x8xf32> to vector<8xf32>
    %83 = vector.shape_cast %82 : vector<8xf32> to vector<8x1xf32>
    %c270 = arith.constant 270 : index
    %c0_37 = arith.constant 0 : index
    %84 = vector.load %arg2[%c270, %c0_37] : memref<272x128xf32, #tpu.memory_space<vmem>>, vector<1x1xf32>
    %85 = vector.broadcast %84 : vector<1x1xf32> to vector<8x1xf32>
    %86 = arith.mulf %85, %83 : vector<8x1xf32>
    %87 = arith.subf %57, %86 : vector<8x1xf32>
    %cst_38 = arith.constant 0.000000e+00 : f32
    %88 = vector.broadcast %cst_38 : f32 to vector<8x111xf32>
    %89 = tpu.concatenate %20, %31, %87, %88 in 1 : vector<8x8xf32>, vector<8x8xf32>, vector<8x1xf32>, vector<8x111xf32> -> vector<8x128xf32>
    %c0_39 = arith.constant 0 : index
    %c0_40 = arith.constant 0 : index
    %90 = vector.load %arg3[%c0_39, %c0_40] : memref<8x128xf32, #tpu.memory_space<vmem>>, vector<8x128xf32>
    tpu.vector_store %arg3[%c0_39, %c0_40], %89 {strides = array<i32>} : memref<8x128xf32, #tpu.memory_space<vmem>>, vector<8x128xf32>,
    return
  }
  func.func @transform_0(%arg0: i32) -> (i32, i32) {
    %c0_i32 = arith.constant 0 : i32
    %c0_i32_0 = arith.constant 0 : i32
    return %arg0, %c0_i32 : i32, i32
  }
  func.func @transform_1(%arg0: i32) -> (i32, i32) {
    %c0_i32 = arith.constant 0 : i32
    %c0_i32_0 = arith.constant 0 : i32
    %c0_i32_1 = arith.constant 0 : i32
    return %c0_i32, %c0_i32_0 : i32, i32
  }
  func.func @transform_2(%arg0: i32) -> (i32, i32) {
    %c0_i32 = arith.constant 0 : i32
    %c0_i32_0 = arith.constant 0 : i32
    return %arg0, %c0_i32 : i32, i32
  }
}

</mosaic_0001>

<llo_original>
// kernel: sac_forward.1
$region0: #{sac_forward.1}
  #allocation0 [shape = 'u32[]', space=smem, size = 0x4, offset = 0x4, fixed_abs, tag = 'smem constant byte address 0x4 - core index']
  #allocation1 [shape = 'u32[144,128]{1,0:T(1,128)}', space=vmem, size = 0x12000, scoped, tag = 'internal scratch']
  %s0 = inlined_call_operand.hbm [shape: f32[8,32], index: 0, kind: input, shape index: {}]
  %s1 = inlined_call_operand.hbm [shape: f32[272,128], index: 1, kind: input, shape index: {}]
  %s2 = inlined_call_operand.vmem [shape: f32[8,128], index: 2, kind: output, shape index: {}]
  %s3 = sld [smem:[#allocation0]]
  $region26: #{sac_forward.1} parent=0
    _
  %s5 = ssub.s32 1, %s3
  %s6 = scalar_select 0, %s5, %s3
  $region1: #{sac_forward.1} parent=0
    #allocation2 [shape = 'u8[4096]{0}', space=vmem, size = 0x1000, scoped, tag = 'input window, operand 0, single buffered']
    #allocation3 [shape = 's32[1]{0}', space=sflag, size = 0x4, scoped, tag = 'scoped memory for sac_forward.1']
    #allocation4 [shape = 'u8[139264]{0}', space=vmem, size = 0x22000, scoped, tag = 'input window, operand 1, single buffered']
    #allocation5 [shape = 's32[1]{0}', space=sflag, size = 0x4, scoped, tag = 'scoped memory for sac_forward.1']
    %7 = vsyncpa [#allocation3], 0
    %8 = vsyncpa [#allocation5], 0
    // Predicated region
    $region2: #{sac_forward.1} parent=1 // pred_check
      _
    $region3: #{sac_forward.1} parent=1 // pred_check_branch
      %10 = sbr.rel (0) target = $region5
    $region4: #{sac_forward.1} parent=1 // pred_region
      %s12 = ssub.s32 128, 128
      %13 = vsyncadd [#allocation3], %s12
      %s15 = sshll.u32 [#allocation2], 4
      %s16 = int_to_ptr.vmem [resolvable:$true] %s15
      %18 = dma.hbm_to_vmem [thread:$0]  %s0, 128, %s16, [#allocation3]
    $region5: #{sac_forward.1} parent=1 // pred_fallthru
      _
    // Predicated region
    $region6: #{sac_forward.1} parent=1 // pred_check
      _
    $region7: #{sac_forward.1} parent=1 // pred_check_branch
      %20 = sbr.rel (0) target = $region9
    $region8: #{sac_forward.1} parent=1 // pred_region
      %s22 = ssub.s32 4352, 4352
      %23 = vsyncadd [#allocation5], %s22
      %s24 = sshll.u32 [#allocation4], 4
      %s25 = int_to_ptr.vmem [resolvable:$true] %s24
      %30 = dma.hbm_to_vmem [thread:$0]  %s1, 4352, %s25, [#allocation5], 128, 128, 8
    $region9: #{sac_forward.1} parent=1 // pred_fallthru
      _
    // Predicated region
    $region10: #{sac_forward.1} parent=1 // pred_check
      _
    $region11: #{sac_forward.1} parent=1 // pred_check_branch
      %32 = sbr.rel (0) target = $region13
    $region12: #{sac_forward.1} parent=1 // pred_region
      %33 = dma.done [#allocation3], 128
    $region13: #{sac_forward.1} parent=1 // pred_fallthru
      _
    // Predicated region
    $region14: #{sac_forward.1} parent=1 // pred_check
      _
    $region15: #{sac_forward.1} parent=1 // pred_check_branch
      %35 = sbr.rel (0) target = $region17
    $region16: #{sac_forward.1} parent=1 // pred_region
      %36 = dma.done [#allocation5], 4352
    $region17: #{sac_forward.1} parent=1 // pred_fallthru
      _
    %v37 = vld [vmem:[#allocation2] sm:$0xff]
    %v38 = vld [vmem:[#allocation4] sm:$0xff]
    %v39 = vld [vmem:[#allocation4 + $0x8] sm:$0xff]
    %v40 = vld [vmem:[#allocation4 + $0x10] sm:$0xff]
    %v41 = vld [vmem:[#allocation4 + $0x18] sm:$0xff]
    %v42 = vld [vmem:[#allocation4 + $0x108] sm:$0x1]
    %v43 = vlaneseq
    %v44 = vshrl.u32 %v43, 7
    %v45 = vsub.s32 0, %v44
    %v46 = vrot.slane %v42, %v45
    %vm47 = vcmask 261120
    %v49 = vsel %vm47, %v37, 0
    %51 = vmatprep.subr.mxu0 0.0
    %52 = vmatpush1.msra.mxu0 0.0
    %53 = vmatprep.subr.mxu0 0.0
    %54 = vmatpush1.msra.mxu0 0.0
    %55 = vmatprep.subr.mxu0 0.0
    %56 = vmatpush1.msra.mxu0 0.0
    %57 = vmatprep.subr.mxu0 0.0
    %58 = vmatpush1.msra.mxu0 0.0
    %59 = vmatprep.subr.mxu0 0.0
    %60 = vmatpush1.msra.mxu0 0.0
    %61 = vmatprep.subr.mxu0 0.0
    %62 = vmatpush1.msra.mxu0 0.0
    %63 = vmatprep.subr.mxu0 0.0
    %64 = vmatpush1.msra.mxu0 0.0
    %65 = vmatprep.subr.mxu0 0.0
    %66 = vmatpush1.msra.mxu0 0.0
    %67 = vmatprep.subr.mxu0 0.0
    %68 = vmatpush1.msra.mxu0 0.0
    %69 = vmatprep.subr.mxu0 0.0
    %70 = vmatpush1.msra.mxu0 0.0
    %71 = vmatprep.subr.mxu0 0.0
    %72 = vmatpush1.msra.mxu0 0.0
    %73 = vmatprep.subr.mxu0 0.0
    %74 = vmatpush1.msra.mxu0 0.0
    %75 = vmatprep.subr.mxu0 0.0
    %76 = vmatpush1.msra.mxu0 %v41
    %77 = vmatprep.subr.mxu0 0.0
    %78 = vmatpush1.msra.mxu0 %v40
    %79 = vmatprep.subr.mxu0 0.0
    %80 = vmatpush1.msra.mxu0 %v39
    %81 = vmatprep.subr.mxu0 0.0
    %82 = vmatpush1.msra.mxu0 %v38
    %83 = vmatprep.subr.mxu0 0.0
    %84 = vmatpush2.msra.mxu0 0.0
    %85 = vmatprep.subr.mxu0 0.0
    %86 = vmatpush2.msra.mxu0 0.0
    %87 = vmatprep.subr.mxu0 0.0
    %88 = vmatpush2.msra.mxu0 0.0
    %89 = vmatprep.subr.mxu0 0.0
    %90 = vmatpush2.msra.mxu0 0.0
    %91 = vmatprep.subr.mxu0 0.0
    %92 = vmatpush2.msra.mxu0 0.0
    %93 = vmatprep.subr.mxu0 0.0
    %94 = vmatpush2.msra.mxu0 0.0
    %95 = vmatprep.subr.mxu0 0.0
    %96 = vmatpush2.msra.mxu0 0.0
    %97 = vmatprep.subr.mxu0 0.0
    %98 = vmatpush2.msra.mxu0 0.0
    %99 = vmatprep.subr.mxu0 0.0
    %100 = vmatpush2.msra.mxu0 0.0
    %101 = vmatprep.subr.mxu0 0.0
    %102 = vmatpush2.msra.mxu0 0.0
    %103 = vmatprep.subr.mxu0 0.0
    %104 = vmatpush2.msra.mxu0 0.0
    %105 = vmatprep.subr.mxu0 0.0
    %106 = vmatpush2.msra.mxu0 0.0
    %107 = vmatprep.subr.mxu0 0.0
    %108 = vmatpush2.msra.mxu0 0.0
    %109 = vmatprep.subr.mxu0 0.0
    %110 = vmatpush2.msra.mxu0 0.0
    %111 = vmatprep.subr.mxu0 0.0
    %112 = vmatpush2.msra.mxu0 0.0
    %113 = vmatprep.subr.mxu0 0.0
    %114 = vmatpush2.msra.mxu0 0.0
    %115 = vmatprep.mubr.f32.mxu0 0.0
    %116 = vmatmul.mubr.f32.gmra.mxu0 %v49
    %v117 = vpop.f32.mrf.mxu0
    %v118 = vadd.f32 %v46, %v117
    %v119 = vpop.f32.mrf.mxu0
    %120 = vdwg.mxu0
    %v121 = vmax.f32 %v118, 0.0
    %v122 = vld [vmem:[#allocation4 + $0x20] sm:$0xff]
    %v123 = vld [vmem:[#allocation4 + $0x28] sm:$0xff]
    %v124 = vld [vmem:[#allocation4 + $0x30] sm:$0xff]
    %v125 = vld [vmem:[#allocation4 + $0x38] sm:$0xff]
    %v126 = vld [vmem:[#allocation4 + $0x109] sm:$0x1]
    %v127 = vlaneseq
    %v128 = vshrl.u32 %v127, 7
    %v129 = vsub.s32 0, %v128
    %v130 = vrot.slane %v126, %v129
    %v132 = vsel %vm47, %v121, 0
    %134 = vmatprep.subr.mxu0 0.0
    %135 = vmatpush1.msra.mxu0 0.0
    %136 = vmatprep.subr.mxu0 0.0
    %137 = vmatpush1.msra.mxu0 0.0
    %138 = vmatprep.subr.mxu0 0.0
    %139 = vmatpush1.msra.mxu0 0.0
    %140 = vmatprep.subr.mxu0 0.0
    %141 = vmatpush1.msra.mxu0 0.0
    %142 = vmatprep.subr.mxu0 0.0
    %143 = vmatpush1.msra.mxu0 0.0
    %144 = vmatprep.subr.mxu0 0.0
    %145 = vmatpush1.msra.mxu0 0.0
    %146 = vmatprep.subr.mxu0 0.0
    %147 = vmatpush1.msra.mxu0 0.0
    %148 = vmatprep.subr.mxu0 0.0
    %149 = vmatpush1.msra.mxu0 0.0
    %150 = vmatprep.subr.mxu0 0.0
    %151 = vmatpush1.msra.mxu0 0.0
    %152 = vmatprep.subr.mxu0 0.0
    %153 = vmatpush1.msra.mxu0 0.0
    %154 = vmatprep.subr.mxu0 0.0
    %155 = vmatpush1.msra.mxu0 0.0
    %156 = vmatprep.subr.mxu0 0.0
    %157 = vmatpush1.msra.mxu0 0.0
    %158 = vmatprep.subr.mxu0 0.0
    %159 = vmatpush1.msra.mxu0 %v125
    %160 = vmatprep.subr.mxu0 0.0
    %161 = vmatpush1.msra.mxu0 %v124
    %162 = vmatprep.subr.mxu0 0.0
    %163 = vmatpush1.msra.mxu0 %v123
    %164 = vmatprep.subr.mxu0 0.0
    %165 = vmatpush1.msra.mxu0 %v122
    %166 = vmatprep.subr.mxu0 0.0
    %167 = vmatpush2.msra.mxu0 0.0
    %168 = vmatprep.subr.mxu0 0.0
    %169 = vmatpush2.msra.mxu0 0.0
    %170 = vmatprep.subr.mxu0 0.0
    %171 = vmatpush2.msra.mxu0 0.0
    %172 = vmatprep.subr.mxu0 0.0
    %173 = vmatpush2.msra.mxu0 0.0
    %174 = vmatprep.subr.mxu0 0.0
    %175 = vmatpush2.msra.mxu0 0.0
    %176 = vmatprep.subr.mxu0 0.0
    %177 = vmatpush2.msra.mxu0 0.0
    %178 = vmatprep.subr.mxu0 0.0
    %179 = vmatpush2.msra.mxu0 0.0
    %180 = vmatprep.subr.mxu0 0.0
    %181 = vmatpush2.msra.mxu0 0.0
    %182 = vmatprep.subr.mxu0 0.0
    %183 = vmatpush2.msra.mxu0 0.0
    %184 = vmatprep.subr.mxu0 0.0
    %185 = vmatpush2.msra.mxu0 0.0
    %186 = vmatprep.subr.mxu0 0.0
    %187 = vmatpush2.msra.mxu0 0.0
    %188 = vmatprep.subr.mxu0 0.0
    %189 = vmatpush2.msra.mxu0 0.0
    %190 = vmatprep.subr.mxu0 0.0
    %191 = vmatpush2.msra.mxu0 0.0
    %192 = vmatprep.subr.mxu0 0.0
    %193 = vmatpush2.msra.mxu0 0.0
    %194 = vmatprep.subr.mxu0 0.0
    %195 = vmatpush2.msra.mxu0 0.0
    %196 = vmatprep.subr.mxu0 0.0
    %197 = vmatpush2.msra.mxu0 0.0
    %198 = vmatprep.mubr.f32.mxu0 0.0
    %199 = vmatmul.mubr.f32.gmra.mxu0 %v132
    %v200 = vpop.f32.mrf.mxu0
    %v201 = vadd.f32 %v130, %v200
    %v202 = vpop.f32.mrf.mxu0
    %203 = vdwg.mxu0
    %v204 = vmax.f32 %v201, 0.0
    %v205 = vld [vmem:[#allocation4 + $0x40] sm:$0xff]
    %v206 = vld [vmem:[#allocation4 + $0x48] sm:$0xff]
    %v207 = vld [vmem:[#allocation4 + $0x50] sm:$0xff]
    %v208 = vld [vmem:[#allocation4 + $0x58] sm:$0xff]
    %v209 = vld [vmem:[#allocation4 + $0x10a] sm:$0x1]
    %v210 = vlaneseq
    %v211 = vshrl.u32 %v210, 7
    %v212 = vsub.s32 0, %v211
    %v213 = vrot.slane %v209, %v212
    %v215 = vsel %vm47, %v204, 0
    %217 = vmatprep.subr.mxu0 0.0
    %218 = vmatpush1.msra.mxu0 0.0
    %219 = vmatprep.subr.mxu0 0.0
    %220 = vmatpush1.msra.mxu0 0.0
    %221 = vmatprep.subr.mxu0 0.0
    %222 = vmatpush1.msra.mxu0 0.0
    %223 = vmatprep.subr.mxu0 0.0
    %224 = vmatpush1.msra.mxu0 0.0
    %225 = vmatprep.subr.mxu0 0.0
    %226 = vmatpush1.msra.mxu0 0.0
    %227 = vmatprep.subr.mxu0 0.0
    %228 = vmatpush1.msra.mxu0 0.0
    %229 = vmatprep.subr.mxu0 0.0
    %230 = vmatpush1.msra.mxu0 0.0
    %231 = vmatprep.subr.mxu0 0.0
    %232 = vmatpush1.msra.mxu0 0.0
    %233 = vmatprep.subr.mxu0 0.0
    %234 = vmatpush1.msra.mxu0 0.0
    %235 = vmatprep.subr.mxu0 0.0
    %236 = vmatpush1.msra.mxu0 0.0
    %237 = vmatprep.subr.mxu0 0.0
    %238 = vmatpush1.msra.mxu0 0.0
    %239 = vmatprep.subr.mxu0 0.0
    %240 = vmatpush1.msra.mxu0 0.0
    %241 = vmatprep.subr.mxu0 0.0
    %242 = vmatpush1.msra.mxu0 %v208
    %243 = vmatprep.subr.mxu0 0.0
    %244 = vmatpush1.msra.mxu0 %v207
    %245 = vmatprep.subr.mxu0 0.0
    %246 = vmatpush1.msra.mxu0 %v206
    %247 = vmatprep.subr.mxu0 0.0
    %248 = vmatpush1.msra.mxu0 %v205
    %249 = vmatprep.subr.mxu0 0.0
    %250 = vmatpush2.msra.mxu0 0.0
    %251 = vmatprep.subr.mxu0 0.0
    %252 = vmatpush2.msra.mxu0 0.0
    %253 = vmatprep.subr.mxu0 0.0
    %254 = vmatpush2.msra.mxu0 0.0
    %255 = vmatprep.subr.mxu0 0.0
    %256 = vmatpush2.msra.mxu0 0.0
    %257 = vmatprep.subr.mxu0 0.0
    %258 = vmatpush2.msra.mxu0 0.0
    %259 = vmatprep.subr.mxu0 0.0
    %260 = vmatpush2.msra.mxu0 0.0
    %261 = vmatprep.subr.mxu0 0.0
    %262 = vmatpush2.msra.mxu0 0.0
    %263 = vmatprep.subr.mxu0 0.0
    %264 = vmatpush2.msra.mxu0 0.0
    %265 = vmatprep.subr.mxu0 0.0
    %266 = vmatpush2.msra.mxu0 0.0
    %267 = vmatprep.subr.mxu0 0.0
    %268 = vmatpush2.msra.mxu0 0.0
    %269 = vmatprep.subr.mxu0 0.0
    %270 = vmatpush2.msra.mxu0 0.0
    %271 = vmatprep.subr.mxu0 0.0
    %272 = vmatpush2.msra.mxu0 0.0
    %273 = vmatprep.subr.mxu0 0.0
    %274 = vmatpush2.msra.mxu0 0.0
    %275 = vmatprep.subr.mxu0 0.0
    %276 = vmatpush2.msra.mxu0 0.0
    %277 = vmatprep.subr.mxu0 0.0
    %278 = vmatpush2.msra.mxu0 0.0
    %279 = vmatprep.subr.mxu0 0.0
    %280 = vmatpush2.msra.mxu0 0.0
    %281 = vmatprep.mubr.f32.mxu0 0.0
    %282 = vmatmul.mubr.f32.gmra.mxu0 %v215
    %v283 = vpop.f32.mrf.mxu0
    %v284 = vadd.f32 %v213, %v283
    %v285 = vpop.f32.mrf.mxu0
    %286 = vdwg.mxu0
    %v287 = vmax.f32 %v284, 0.0
    %v288 = vand.u32 2147483647, %v284
    %v289 = vsub.f32 0.0, %v288
    %v290 = vmul.f32 %v289, 1.442695
    %v291 = vpow.pop %v290
    %v292 = vadd.f32 %v291, 1.0
    %v293 = vlog2.pop %v292
    %v294 = vmul.f32 %v293, 0.6931472
    %v295 = vmul.f32 -0.5, %v291
    %v296 = vadd.f32 %v295, 1.0
    %v297 = vmul.f32 %v296, %v291
    %v298 = vand.u32 2147483647, %v291
    %vm299 = vcmp.lt.f32.partialorder %v298, 0.0004427343
    %v300 = vsel %vm299, %v297, %v294
    %v301 = vadd.f32 %v287, %v300
    %v302 = vadd.f32 %v301, 1e-07
    %v303 = vtanh.pop %v284
    %v304 = vld [vmem:[#allocation4 + $0x60] sm:$0xff]
    %v305 = vld [vmem:[#allocation4 + $0x68] sm:$0xff]
    %v306 = vld [vmem:[#allocation4 + $0x70] sm:$0xff]
    %v307 = vld [vmem:[#allocation4 + $0x78] sm:$0xff]
    %v308 = vld [vmem:[#allocation4 + $0x80] sm:$0xff]
    %vm309 = vcmask 64512
    %v311 = vsel %vm309, %v303, 0
    %313 = vmatprep.subr.mxu0 0.0
    %314 = vmatpush1.msra.mxu0 0.0
    %315 = vmatprep.subr.mxu0 0.0
    %316 = vmatpush1.msra.mxu0 0.0
    %317 = vmatprep.subr.mxu0 0.0
    %318 = vmatpush1.msra.mxu0 0.0
    %319 = vmatprep.subr.mxu0 0.0
    %320 = vmatpush1.msra.mxu0 0.0
    %321 = vmatprep.subr.mxu0 0.0
    %322 = vmatpush1.msra.mxu0 0.0
    %323 = vmatprep.subr.mxu0 0.0
    %324 = vmatpush1.msra.mxu0 0.0
    %325 = vmatprep.subr.mxu0 0.0
    %326 = vmatpush1.msra.mxu0 0.0
    %327 = vmatprep.subr.mxu0 0.0
    %328 = vmatpush1.msra.mxu0 0.0
    %329 = vmatprep.subr.mxu0 0.0
    %330 = vmatpush1.msra.mxu0 0.0
    %331 = vmatprep.subr.mxu0 0.0
    %332 = vmatpush1.msra.mxu0 0.0
    %333 = vmatprep.subr.mxu0 0.0
    %334 = vmatpush1.msra.mxu0 0.0
    %335 = vmatprep.subr.mxu0 0.0
    %336 = vmatpush1.msra.mxu0 0.0
    %337 = vmatprep.subr.mxu0 0.0
    %338 = vmatpush1.msra.mxu0 0.0
    %339 = vmatprep.subr.mxu0 0.0
    %340 = vmatpush1.msra.mxu0 0.0
    %341 = vmatprep.subr.mxu0 0.0
    %342 = vmatpush1.msra.mxu0 0.0
    %343 = vmatprep.subr.mxu0 0.0
    %344 = vmatpush1.msra.mxu0 %v308
    %345 = vmatprep.subr.mxu0 0.0
    %346 = vmatpush2.msra.mxu0 0.0
    %347 = vmatprep.subr.mxu0 0.0
    %348 = vmatpush2.msra.mxu0 0.0
    %349 = vmatprep.subr.mxu0 0.0
    %350 = vmatpush2.msra.mxu0 0.0
    %351 = vmatprep.subr.mxu0 0.0
    %352 = vmatpush2.msra.mxu0 0.0
    %353 = vmatprep.subr.mxu0 0.0
    %354 = vmatpush2.msra.mxu0 0.0
    %355 = vmatprep.subr.mxu0 0.0
    %356 = vmatpush2.msra.mxu0 0.0
    %357 = vmatprep.subr.mxu0 0.0
    %358 = vmatpush2.msra.mxu0 0.0
    %359 = vmatprep.subr.mxu0 0.0
    %360 = vmatpush2.msra.mxu0 0.0
    %361 = vmatprep.subr.mxu0 0.0
    %362 = vmatpush2.msra.mxu0 0.0
    %363 = vmatprep.subr.mxu0 0.0
    %364 = vmatpush2.msra.mxu0 0.0
    %365 = vmatprep.subr.mxu0 0.0
    %366 = vmatpush2.msra.mxu0 0.0
    %367 = vmatprep.subr.mxu0 0.0
    %368 = vmatpush2.msra.mxu0 0.0
    %369 = vmatprep.subr.mxu0 0.0
    %370 = vmatpush2.msra.mxu0 0.0
    %371 = vmatprep.subr.mxu0 0.0
    %372 = vmatpush2.msra.mxu0 0.0
    %373 = vmatprep.subr.mxu0 0.0
    %374 = vmatpush2.msra.mxu0 0.0
    %375 = vmatprep.subr.mxu0 0.0
    %376 = vmatpush2.msra.mxu0 0.0
    %377 = vmatprep.mubr.f32.mxu0 0.0
    %378 = vmatmul.mubr.f32.gmra.mxu0 %v311
    %v379 = vpop.f32.mrf.mxu0
    %v380 = vadd.f32 0.0, %v379
    %v381 = vpop.f32.mrf.mxu0
    %382 = vdwg.mxu0
    %383 = vmatprep.subr.mxu0 0.0
    %384 = vmatpush1.msra.mxu0 0.0
    %385 = vmatprep.subr.mxu0 0.0
    %386 = vmatpush1.msra.mxu0 0.0
    %387 = vmatprep.subr.mxu0 0.0
    %388 = vmatpush1.msra.mxu0 0.0
    %389 = vmatprep.subr.mxu0 0.0
    %390 = vmatpush1.msra.mxu0 0.0
    %391 = vmatprep.subr.mxu0 0.0
    %392 = vmatpush1.msra.mxu0 0.0
    %393 = vmatprep.subr.mxu0 0.0
    %394 = vmatpush1.msra.mxu0 0.0
    %395 = vmatprep.subr.mxu0 0.0
    %396 = vmatpush1.msra.mxu0 0.0
    %397 = vmatprep.subr.mxu0 0.0
    %398 = vmatpush1.msra.mxu0 0.0
    %399 = vmatprep.subr.mxu0 0.0
    %400 = vmatpush1.msra.mxu0 0.0
    %401 = vmatprep.subr.mxu0 0.0
    %402 = vmatpush1.msra.mxu0 0.0
    %403 = vmatprep.subr.mxu0 0.0
    %404 = vmatpush1.msra.mxu0 0.0
    %405 = vmatprep.subr.mxu0 0.0
    %406 = vmatpush1.msra.mxu0 0.0
    %407 = vmatprep.subr.mxu0 0.0
    %408 = vmatpush1.msra.mxu0 %v307
    %409 = vmatprep.subr.mxu0 0.0
    %410 = vmatpush1.msra.mxu0 %v306
    %411 = vmatprep.subr.mxu0 0.0
    %412 = vmatpush1.msra.mxu0 %v305
    %413 = vmatprep.subr.mxu0 0.0
    %414 = vmatpush1.msra.mxu0 %v304
    %415 = vmatprep.subr.mxu0 0.0
    %416 = vmatpush2.msra.mxu0 0.0
    %417 = vmatprep.subr.mxu0 0.0
    %418 = vmatpush2.msra.mxu0 0.0
    %419 = vmatprep.subr.mxu0 0.0
    %420 = vmatpush2.msra.mxu0 0.0
    %421 = vmatprep.subr.mxu0 0.0
    %422 = vmatpush2.msra.mxu0 0.0
    %423 = vmatprep.subr.mxu0 0.0
    %424 = vmatpush2.msra.mxu0 0.0
    %425 = vmatprep.subr.mxu0 0.0
    %426 = vmatpush2.msra.mxu0 0.0
    %427 = vmatprep.subr.mxu0 0.0
    %428 = vmatpush2.msra.mxu0 0.0
    %429 = vmatprep.subr.mxu0 0.0
    %430 = vmatpush2.msra.mxu0 0.0
    %431 = vmatprep.subr.mxu0 0.0
    %432 = vmatpush2.msra.mxu0 0.0
    %433 = vmatprep.subr.mxu0 0.0
    %434 = vmatpush2.msra.mxu0 0.0
    %435 = vmatprep.subr.mxu0 0.0
    %436 = vmatpush2.msra.mxu0 0.0
    %437 = vmatprep.subr.mxu0 0.0
    %438 = vmatpush2.msra.mxu0 0.0
    %439 = vmatprep.subr.mxu0 0.0
    %440 = vmatpush2.msra.mxu0 0.0
    %441 = vmatprep.subr.mxu0 0.0
    %442 = vmatpush2.msra.mxu0 0.0
    %443 = vmatprep.subr.mxu0 0.0
    %444 = vmatpush2.msra.mxu0 0.0
    %445 = vmatprep.subr.mxu0 0.0
    %446 = vmatpush2.msra.mxu0 0.0
    %447 = vmatprep.mubr.f32.mxu0 0.0
    %448 = vmatmul.mubr.f32.gmra.mxu0 %v49
    %v449 = vpop.f32.mrf.mxu0
    %v450 = vadd.f32 %v380, %v449
    %v451 = vpop.f32.mrf.mxu0
    %452 = vdwg.mxu0
    %v453 = vld [vmem:[#allocation4 + $0x10b] sm:$0x1]
    %v454 = vlaneseq
    %v455 = vshrl.u32 %v454, 7
    %v456 = vsub.s32 0, %v455
    %v457 = vrot.slane %v453, %v456
    %v458 = vadd.f32 %v450, %v457
    %v459 = vmax.f32 %v458, 0.0
    %v460 = vld [vmem:[#allocation4 + $0x88] sm:$0xff]
    %v461 = vld [vmem:[#allocation4 + $0x90] sm:$0xff]
    %v462 = vld [vmem:[#allocation4 + $0x98] sm:$0xff]
    %v463 = vld [vmem:[#allocation4 + $0xa0] sm:$0xff]
    %v464 = vld [vmem:[#allocation4 + $0xa8] sm:$0xff]
    %v465 = vld [vmem:[#allocation4 + $0xb0] sm:$0xff]
    %v466 = vld [vmem:[#allocation4 + $0xb8] sm:$0xff]
    %v467 = vld [vmem:[#allocation4 + $0xc0] sm:$0xff]
    %v468 = vld [vmem:[#allocation4 + $0x10c] sm:$0x1]
    %v469 = vlaneseq
    %v470 = vshrl.u32 %v469, 7
    %v471 = vsub.s32 0, %v470
    %v472 = vrot.slane %v468, %v471
    %vm473 = vcmask 523264
    %v475 = vsel %vm473, %v459, 0
    %477 = vmatprep.subr.mxu0 0.0
    %478 = vmatpush1.msra.mxu0 0.0
    %479 = vmatprep.subr.mxu0 0.0
    %480 = vmatpush1.msra.mxu0 0.0
    %481 = vmatprep.subr.mxu0 0.0
    %482 = vmatpush1.msra.mxu0 0.0
    %483 = vmatprep.subr.mxu0 0.0
    %484 = vmatpush1.msra.mxu0 0.0
    %485 = vmatprep.subr.mxu0 0.0
    %486 = vmatpush1.msra.mxu0 0.0
    %487 = vmatprep.subr.mxu0 0.0
    %488 = vmatpush1.msra.mxu0 0.0
    %489 = vmatprep.subr.mxu0 0.0
    %490 = vmatpush1.msra.mxu0 0.0
    %491 = vmatprep.subr.mxu0 0.0
    %492 = vmatpush1.msra.mxu0 0.0
    %493 = vmatprep.subr.mxu0 0.0
    %494 = vmatpush1.msra.mxu0 %v467
    %495 = vmatprep.subr.mxu0 0.0
    %496 = vmatpush1.msra.mxu0 %v466
    %497 = vmatprep.subr.mxu0 0.0
    %498 = vmatpush1.msra.mxu0 %v465
    %499 = vmatprep.subr.mxu0 0.0
    %500 = vmatpush1.msra.mxu0 %v464
    %501 = vmatprep.subr.mxu0 0.0
    %502 = vmatpush1.msra.mxu0 %v463
    %503 = vmatprep.subr.mxu0 0.0
    %504 = vmatpush1.msra.mxu0 %v462
    %505 = vmatprep.subr.mxu0 0.0
    %506 = vmatpush1.msra.mxu0 %v461
    %507 = vmatprep.subr.mxu0 0.0
    %508 = vmatpush1.msra.mxu0 %v460
    %509 = vmatprep.subr.mxu0 0.0
    %510 = vmatpush2.msra.mxu0 0.0
    %511 = vmatprep.subr.mxu0 0.0
    %512 = vmatpush2.msra.mxu0 0.0
    %513 = vmatprep.subr.mxu0 0.0
    %514 = vmatpush2.msra.mxu0 0.0
    %515 = vmatprep.subr.mxu0 0.0
    %516 = vmatpush2.msra.mxu0 0.0
    %517 = vmatprep.subr.mxu0 0.0
    %518 = vmatpush2.msra.mxu0 0.0
    %519 = vmatprep.subr.mxu0 0.0
    %520 = vmatpush2.msra.mxu0 0.0
    %521 = vmatprep.subr.mxu0 0.0
    %522 = vmatpush2.msra.mxu0 0.0
    %523 = vmatprep.subr.mxu0 0.0
    %524 = vmatpush2.msra.mxu0 0.0
    %525 = vmatprep.subr.mxu0 0.0
    %526 = vmatpush2.msra.mxu0 0.0
    %527 = vmatprep.subr.mxu0 0.0
    %528 = vmatpush2.msra.mxu0 0.0
    %529 = vmatprep.subr.mxu0 0.0
    %530 = vmatpush2.msra.mxu0 0.0
    %531 = vmatprep.subr.mxu0 0.0
    %532 = vmatpush2.msra.mxu0 0.0
    %533 = vmatprep.subr.mxu0 0.0
    %534 = vmatpush2.msra.mxu0 0.0
    %535 = vmatprep.subr.mxu0 0.0
    %536 = vmatpush2.msra.mxu0 0.0
    %537 = vmatprep.subr.mxu0 0.0
    %538 = vmatpush2.msra.mxu0 0.0
    %539 = vmatprep.subr.mxu0 0.0
    %540 = vmatpush2.msra.mxu0 0.0
    %541 = vmatprep.mubr.f32.mxu0 0.0
    %542 = vmatmul.mubr.f32.gmra.mxu0 %v475
    %v543 = vpop.f32.mrf.mxu0
    %v544 = vadd.f32 %v472, %v543
    %v545 = vpop.f32.mrf.mxu0
    %546 = vdwg.mxu0
    %v547 = vmax.f32 %v544, 0.0
    %v548 = vld [vmem:[#allocation4 + $0xc8] sm:$0xff]
    %v549 = vld [vmem:[#allocation4 + $0xd0] sm:$0xff]
    %v550 = vld [vmem:[#allocation4 + $0xd8] sm:$0xff]
    %v551 = vld [vmem:[#allocation4 + $0xe0] sm:$0xff]
    %v552 = vld [vmem:[#allocation4 + $0xe8] sm:$0xff]
    %v553 = vld [vmem:[#allocation4 + $0xf0] sm:$0xff]
    %v554 = vld [vmem:[#allocation4 + $0xf8] sm:$0xff]
    %v555 = vld [vmem:[#allocation4 + $0x100] sm:$0xff]
    %v556 = vld [vmem:[#allocation4 + $0x10d] sm:$0x1]
    %v557 = vlaneseq
    %v558 = vshrl.u32 %v557, 7
    %v559 = vsub.s32 0, %v558
    %v560 = vrot.slane %v556, %v559
    %v562 = vsel %vm473, %v547, 0
    %564 = vmatprep.subr.mxu0 0.0
    %565 = vmatpush1.msra.mxu0 0.0
    %566 = vmatprep.subr.mxu0 0.0
    %567 = vmatpush1.msra.mxu0 0.0
    %568 = vmatprep.subr.mxu0 0.0
    %569 = vmatpush1.msra.mxu0 0.0
    %570 = vmatprep.subr.mxu0 0.0
    %571 = vmatpush1.msra.mxu0 0.0
    %572 = vmatprep.subr.mxu0 0.0
    %573 = vmatpush1.msra.mxu0 0.0
    %574 = vmatprep.subr.mxu0 0.0
    %575 = vmatpush1.msra.mxu0 0.0
    %576 = vmatprep.subr.mxu0 0.0
    %577 = vmatpush1.msra.mxu0 0.0
    %578 = vmatprep.subr.mxu0 0.0
    %579 = vmatpush1.msra.mxu0 0.0
    %580 = vmatprep.subr.mxu0 0.0
    %581 = vmatpush1.msra.mxu0 %v555
    %582 = vmatprep.subr.mxu0 0.0
    %583 = vmatpush1.msra.mxu0 %v554
    %584 = vmatprep.subr.mxu0 0.0
    %585 = vmatpush1.msra.mxu0 %v553
    %586 = vmatprep.subr.mxu0 0.0
    %587 = vmatpush1.msra.mxu0 %v552
    %588 = vmatprep.subr.mxu0 0.0
    %589 = vmatpush1.msra.mxu0 %v551
    %590 = vmatprep.subr.mxu0 0.0
    %591 = vmatpush1.msra.mxu0 %v550
    %592 = vmatprep.subr.mxu0 0.0
    %593 = vmatpush1.msra.mxu0 %v549
    %594 = vmatprep.subr.mxu0 0.0
    %595 = vmatpush1.msra.mxu0 %v548
    %596 = vmatprep.subr.mxu0 0.0
    %597 = vmatpush2.msra.mxu0 0.0
    %598 = vmatprep.subr.mxu0 0.0
    %599 = vmatpush2.msra.mxu0 0.0
    %600 = vmatprep.subr.mxu0 0.0
    %601 = vmatpush2.msra.mxu0 0.0
    %602 = vmatprep.subr.mxu0 0.0
    %603 = vmatpush2.msra.mxu0 0.0
    %604 = vmatprep.subr.mxu0 0.0
    %605 = vmatpush2.msra.mxu0 0.0
    %606 = vmatprep.subr.mxu0 0.0
    %607 = vmatpush2.msra.mxu0 0.0
    %608 = vmatprep.subr.mxu0 0.0
    %609 = vmatpush2.msra.mxu0 0.0
    %610 = vmatprep.subr.mxu0 0.0
    %611 = vmatpush2.msra.mxu0 0.0
    %612 = vmatprep.subr.mxu0 0.0
    %613 = vmatpush2.msra.mxu0 0.0
    %614 = vmatprep.subr.mxu0 0.0
    %615 = vmatpush2.msra.mxu0 0.0
    %616 = vmatprep.subr.mxu0 0.0
    %617 = vmatpush2.msra.mxu0 0.0
    %618 = vmatprep.subr.mxu0 0.0
    %619 = vmatpush2.msra.mxu0 0.0
    %620 = vmatprep.subr.mxu0 0.0
    %621 = vmatpush2.msra.mxu0 0.0
    %622 = vmatprep.subr.mxu0 0.0
    %623 = vmatpush2.msra.mxu0 0.0
    %624 = vmatprep.subr.mxu0 0.0
    %625 = vmatpush2.msra.mxu0 0.0
    %626 = vmatprep.subr.mxu0 0.0
    %627 = vmatpush2.msra.mxu0 0.0
    %628 = vmatprep.mubr.f32.mxu0 0.0
    %629 = vmatmul.mubr.f32.gmra.mxu0 %v562
    %v630 = vpop.f32.mrf.mxu0
    %v631 = vadd.f32 %v560, %v630
    %v632 = vpop.f32.mrf.mxu0
    %633 = vdwg.mxu0
    %635 = vrot.lane.b32.xlu0 %v631, 127
    %v636 = vpop.permute.xlu0 %635
    %v638 = vmin.f32 %v631, %v636
    %v639 = vlog2.pop %v302
    %v640 = vmul.f32 %v639, 0.6931472
    %v641 = vsub.f32 0.0, %v640
    %v642 = vsub.f32 %v641, 0.9189385
    %v643 = vsub.f32 0.6931472, %v284
    %v644 = vmul.f32 %v284, -2.0
    %v645 = vmax.f32 %v644, 0.0
    %v646 = vand.u32 2147483647, %v644
    %v647 = vsub.f32 0.0, %v646
    %v648 = vmul.f32 %v647, 1.442695
    %v649 = vpow.pop %v648
    %v650 = vadd.f32 %v649, 1.0
    %v651 = vlog2.pop %v650
    %v652 = vmul.f32 %v651, 0.6931472
    %v653 = vmul.f32 -0.5, %v649
    %v654 = vadd.f32 %v653, 1.0
    %v655 = vmul.f32 %v654, %v649
    %v656 = vand.u32 2147483647, %v649
    %vm657 = vcmp.lt.f32.partialorder %v656, 0.0004427343
    %v658 = vsel %vm657, %v655, %v652
    %v659 = vadd.f32 %v645, %v658
    %v660 = vsub.f32 %v643, %v659
    %v661 = vmul.f32 %v660, 2.0
    %663 = vrot.lane.b32.xlu0 %v661, 8
    %v664 = vpop.permute.xlu0 %663
    %v666 = vsub.f32 %v642, %v664
    %668 = vrot.lane.b32.xlu0 %v666, 120
    %v669 = vpop.permute.xlu0 %668
    %v671 = vsel %vm309, %v669, 0.0
    %672 = vadd.xlane.f32.xlu0 %v671
    %v673 = vpop.xlane.xlu0 %672
    %v674 = vld [vmem:[#allocation4 + $0x10e] sm:$0x1]
    %v675 = vlaneseq
    %v676 = vshrl.u32 %v675, 7
    %v677 = vsub.s32 0, %v676
    %v678 = vrot.slane %v674, %v677
    %v679 = vmul.f32 %v678, %v673
    %v680 = vsub.f32 %v638, %v679
    %682 = vrot.lane.b32.xlu0 %v680, 16
    %v683 = vpop.permute.xlu0 %682
    %v685 = vsel %vm309, %v284, %v302
    %vm686 = vcmask 130048
    %v687 = vsel %vm686, %v685, %v683
    %vm688 = vcmask 138240
    %v689 = vsel %vm688, %v687, 0.0
    %690 = vst [vmem:[%s2] sm:$0xff] %v689
    // Predicated region
    $region18: #{sac_forward.1} parent=1 // pred_check
      _
    $region19: #{sac_forward.1} parent=1 // pred_check_branch
      %692 = sbr.rel (0) target = $region21
    $region20: #{sac_forward.1} parent=1 // pred_region
      _
    $region21: #{sac_forward.1} parent=1 // pred_fallthru
      _
    // Predicated region
    $region22: #{sac_forward.1} parent=1 // pred_check
      _
    $region23: #{sac_forward.1} parent=1 // pred_check_branch
      %694 = sbr.rel (0) target = $region25
    $region24: #{sac_forward.1} parent=1 // pred_region
      _
    $region25: #{sac_forward.1} parent=1 // pred_fallthru
      _
    %695 = vsyncpa [#allocation3], 1
    %696 = vsyncpa [#allocation5], 1

</llo_original>
